<compile_context>
chip_gen: v7x
topology: tpu7x:2x2x1
jax: 0.10.0
libtpu: 0.0.40
codegen_flags: <defaults>
</compile_context>

<pallas_src>
import functools

import jax
import jax.numpy as jnp
from jax.experimental import pallas as pl
from jax.experimental.pallas import tpu as pltpu


_LANE = 128
_SUBLANE = 8


def _round_up(x, m):
    return ((x + m - 1) // m) * m


def _pad2(a, rows, cols):
    return jnp.pad(a, ((0, rows - a.shape[0]), (0, cols - a.shape[1])))


def _make_mlp_kernel(num_hidden_layers):
    """Fused-MLP kernel over one batch tile.

    Ref order:
      x_ref                                  bf16 [TB, d_in_pad]
      (w_i bf16 [d_prev_pad, d_i_pad], b_i f32 [1, d_i_pad]) per hidden layer
      w_out  f32 [1, d_last_pad]   (output-layer weight as a row vector)
      b_out  f32 [1, 1]
      out_ref f32 [TB, 1]
    """

    def kernel(*refs):
        x_ref = refs[0]
        out_ref = refs[-1]
        params = refs[1:-1]
        assert len(params) == 2 * num_hidden_layers + 2

        h = x_ref[...]  # bf16 activation tile
        for i in range(num_hidden_layers):
            w = params[2 * i][...]        # bf16 matmul operand (MXU)
            b = params[2 * i + 1][...]    # f32 bias row
            z = jnp.dot(h, w, preferred_element_type=jnp.float32) + b
            hf = jax.nn.sigmoid(z)        # elementwise stays f32 (v5e-safe)
            # Re-cast to bf16 only when another MXU pass will consume it.
            h = hf.astype(jnp.bfloat16) if i < num_hidden_layers - 1 else hf

        # Output layer Linear(d_last, 1): VPU multiply + XLU row reduction.
        # Avoids an N=1 MXU pass whose result lanes are almost all masked.
        w_out = params[-2][...]           # f32 [1, d_last_pad]
        b_out = params[-1][...]           # f32 [1, 1]
        out = jnp.sum(h * w_out, axis=-1, keepdims=True) + b_out
        out_ref[...] = out.astype(out_ref.dtype)

    return kernel


def init_mlp_params(key, hidden_params):
    """Matches the PyTorch init: weight ~ Normal(0, 1) in (out, in) layout
    (returned pre-transposed to [in, out]), bias filled with 1.0.

    Returns flat list [W0, b0, ..., W_{H-1}, b_{H-1}, W_out, b_out], f32.
    """
    dims = list(hidden_params) + [(hidden_params[-1][-1], 1)]  # + Output_Layer
    params = []
    for (fan_in, fan_out) in dims:
        key, wk = jax.random.split(key)
        w_torch = jax.random.normal(wk, (fan_out, fan_in), dtype=jnp.float32)
        params.append(jnp.transpose(w_torch))                   # [in, out]
        params.append(jnp.ones((fan_out,), dtype=jnp.float32))  # bias = 1.0
    return params


@functools.partial(jax.jit, static_argnums=(2,))
def mlp_forward(x, params, num_hidden_layers):
    batch, d_in = x.shape

    # ---- batch tile: MXU/lane friendly, bounded VMEM (fits v7x's 64 MiB) ----
    if batch >= 256:
        tb = 256                                  # /256 for v6e/v7x, /128 for v5e
    else:
        tb = _round_up(batch, _SUBLANE)
    b_pad = _round_up(batch, tb)

    # ---- pad + cast: lane-aligned bf16 matmul operands, f32 biases ----------
    d_in_pad = _round_up(d_in, _LANE)
    x_p = jnp.pad(x, ((0, b_pad - batch), (0, d_in_pad - d_in))).astype(jnp.bfloat16)

    kernel_args = []
    prev_pad = d_in_pad
    for i in range(num_hidden_layers):
        w = params[2 * i]              # [d_prev, d_i]
        b = params[2 * i + 1]          # [d_i]
        dout = w.shape[1]
        dout_pad = _round_up(dout, _LANE)
        # Zero-padded rows -> padded input lanes contribute nothing;
        # zero-padded cols + zero bias pad -> padded hidden lanes are sigmoid(0),
        # which the next layer's zero-padded rows then ignore.
        kernel_args.append(_pad2(w, prev_pad, dout_pad).astype(jnp.bfloat16))
        kernel_args.append(
            jnp.pad(b, (0, dout_pad - dout)).reshape(1, dout_pad).astype(jnp.float32))
        prev_pad = dout_pad

    w_out = params[-2]                 # [d_last, 1]
    b_out = params[-1]                 # [1]
    w_out_row = jnp.pad(w_out[:, 0], (0, prev_pad - w_out.shape[0]))
    kernel_args.append(w_out_row.reshape(1, prev_pad).astype(jnp.float32))
    kernel_args.append(b_out.reshape(1, 1).astype(jnp.float32))

    kernel = _make_mlp_kernel(num_hidden_layers)

    grid = (b_pad // tb,)
    # x/out stream batch tiles; weights/biases use a constant index_map so they
    # stay VMEM-resident across the whole grid (fetched once).
    in_specs = [pl.BlockSpec((tb, d_in_pad), lambda i: (i, 0))]
    for p in kernel_args:
        in_specs.append(pl.BlockSpec(p.shape, lambda i: (0, 0)))
    out_specs = pl.BlockSpec((tb, 1), lambda i: (i, 0))

    out_p = pl.pallas_call(
        kernel,
        out_shape=jax.ShapeDtypeStruct((b_pad, 1), jnp.float32),
        grid=grid,
        in_specs=in_specs,
        out_specs=out_specs,
        compiler_params=pltpu.CompilerParams(
            # Batch tiles are independent -> megacore can split them (v7x 2 TCs).
            dimension_semantics=("parallel",)),
    )(x_p, *kernel_args)
    return out_p[:batch]


def mlp_reference(x, params, num_hidden_layers):
    """Pure-JAX reference mirroring the kernel's numerics (bf16 matmul operands,
    f32 accumulation / bias / sigmoid)."""
    h = x.astype(jnp.bfloat16)
    for i in range(num_hidden_layers):
        w = params[2 * i].astype(jnp.bfloat16)
        b = params[2 * i + 1].astype(jnp.float32)
        z = jnp.dot(h, w, preferred_element_type=jnp.float32) + b
        hf = jax.nn.sigmoid(z)
        h = hf.astype(jnp.bfloat16) if i < num_hidden_layers - 1 else hf
    w_out = params[-2][:, 0].astype(jnp.float32)
    b_out = params[-1].astype(jnp.float32)
    return jnp.sum(h * w_out[None, :], axis=-1, keepdims=True) + b_out[None, :]


if __name__ == "__main__":
    # hidden_params = [(in, hidden), (hidden, hidden)] -> output Linear(hidden, 1)
    hidden_params = [(16, 32), (32, 32)]
    num_hidden = len(hidden_params)
    batch = 8

    key = jax.random.PRNGKey(0)
    key, xk = jax.random.split(key)
    x = jax.random.normal(xk, (batch, hidden_params[0][0]), dtype=jnp.float32)

    params = init_mlp_params(key, hidden_params)

    out = mlp_forward(x, params, num_hidden)
    out = jax.block_until_ready(out)

    ref = mlp_reference(x, params, num_hidden)
    assert out.shape == (batch, 1), out.shape
    assert jnp.allclose(out, ref, atol=1e-3, rtol=1e-3), "mismatch vs reference"

    print("KERNEL_OK")
</pallas_src>

<mosaic_0001>
module attributes {stable_mosaic.version = 11 : i64} {
  func.func @kernel(%arg0: i32, %arg1: memref<8x128xbf16, #tpu.memory_space<vmem>>, %arg2: memref<128x128xbf16, #tpu.memory_space<vmem>>, %arg3: memref<1x128xf32, #tpu.memory_space<vmem>>, %arg4: memref<128x128xbf16, #tpu.memory_space<vmem>>, %arg5: memref<1x128xf32, #tpu.memory_space<vmem>>, %arg6: memref<1x128xf32, #tpu.memory_space<vmem>>, %arg7: memref<1x1xf32, #tpu.memory_space<vmem>>, %arg8: memref<8x1xf32, #tpu.memory_space<vmem>>) attributes {dimension_semantics = [#tpu.dimension_semantics<parallel>], iteration_bounds = array<i64: 1>, scalar_prefetch = 0 : i64, scratch_operands = 0 : i64, tpu.core_type = #tpu.core_type<tc>, window_params = [{transform_indices = @transform_0, window_bounds = array<i64: 8, 128>}, {pipeline_mode = #tpu.pipeline_mode<synchronous>, transform_indices = @transform_1, window_bounds = array<i64: 128, 128>}, {pipeline_mode = #tpu.pipeline_mode<synchronous>, transform_indices = @transform_2, window_bounds = array<i64: 1, 128>}, {pipeline_mode = #tpu.pipeline_mode<synchronous>, transform_indices = @transform_3, window_bounds = array<i64: 128, 128>}, {pipeline_mode = #tpu.pipeline_mode<synchronous>, transform_indices = @transform_4, window_bounds = array<i64: 1, 128>}, {pipeline_mode = #tpu.pipeline_mode<synchronous>, transform_indices = @transform_5, window_bounds = array<i64: 1, 128>}, {pipeline_mode = #tpu.pipeline_mode<synchronous>, transform_indices = @transform_6, window_bounds = array<i64: 1, 1>}, {transform_indices = @transform_7, window_bounds = array<i64: 8, 1>}]} {
    %c0 = arith.constant 0 : index
    %c0_0 = arith.constant 0 : index
    %0 = vector.load %arg1[%c0, %c0_0] : memref<8x128xbf16, #tpu.memory_space<vmem>>, vector<8x128xbf16>
    %c0_1 = arith.constant 0 : index
    %c0_2 = arith.constant 0 : index
    %1 = vector.load %arg2[%c0_1, %c0_2] : memref<128x128xbf16, #tpu.memory_space<vmem>>, vector<128x128xbf16>
    %c0_3 = arith.constant 0 : index
    %c0_4 = arith.constant 0 : index
    %2 = vector.load %arg3[%c0_3, %c0_4] : memref<1x128xf32, #tpu.memory_space<vmem>>, vector<1x128xf32>
    %cst = arith.constant dense<0.000000e+00> : vector<8x128xf32>
    %3 = tpu.matmul %0, %1, %cst {dimension_numbers = #tpu.dot_dimension_numbers<[1], [0], [0], [1], [0, 0, 1, 1], [], []>} : vector<8x128xbf16>, vector<128x128xbf16>, vector<8x128xf32> -> vector<8x128xf32>
    %4 = vector.broadcast %2 : vector<1x128xf32> to vector<8x128xf32>
    %5 = arith.addf %3, %4 : vector<8x128xf32>
    %6 = arith.negf %5 : vector<8x128xf32>
    %7 = math.exp %6 : vector<8x128xf32>
    %cst_5 = arith.constant 1.000000e+00 : f32
    %8 = vector.broadcast %cst_5 : f32 to vector<8x128xf32>
    %9 = arith.addf %8, %7 : vector<8x128xf32>
    %10 = arith.divf %8, %9 : vector<8x128xf32>
    %11 = arith.truncf %10 : vector<8x128xf32> to vector<8x128xbf16>
    %c0_6 = arith.constant 0 : index
    %c0_7 = arith.constant 0 : index
    %12 = vector.load %arg4[%c0_6, %c0_7] : memref<128x128xbf16, #tpu.memory_space<vmem>>, vector<128x128xbf16>
    %c0_8 = arith.constant 0 : index
    %c0_9 = arith.constant 0 : index
    %13 = vector.load %arg5[%c0_8, %c0_9] : memref<1x128xf32, #tpu.memory_space<vmem>>, vector<1x128xf32>
    %cst_10 = arith.constant dense<0.000000e+00> : vector<8x128xf32>
    %14 = tpu.matmul %11, %12, %cst_10 {dimension_numbers = #tpu.dot_dimension_numbers<[1], [0], [0], [1], [0, 0, 1, 1], [], []>} : vector<8x128xbf16>, vector<128x128xbf16>, vector<8x128xf32> -> vector<8x128xf32>
    %15 = vector.broadcast %13 : vector<1x128xf32> to vector<8x128xf32>
    %16 = arith.addf %14, %15 : vector<8x128xf32>
    %17 = arith.negf %16 : vector<8x128xf32>
    %18 = math.exp %17 : vector<8x128xf32>
    %cst_11 = arith.constant 1.000000e+00 : f32
    %19 = vector.broadcast %cst_11 : f32 to vector<8x128xf32>
    %20 = arith.addf %19, %18 : vector<8x128xf32>
    %21 = arith.divf %19, %20 : vector<8x128xf32>
    %c0_12 = arith.constant 0 : index
    %c0_13 = arith.constant 0 : index
    %22 = vector.load %arg6[%c0_12, %c0_13] : memref<1x128xf32, #tpu.memory_space<vmem>>, vector<1x128xf32>
    %c0_14 = arith.constant 0 : index
    %c0_15 = arith.constant 0 : index
    %23 = vector.load %arg7[%c0_14, %c0_15] : memref<1x1xf32, #tpu.memory_space<vmem>>, vector<1x1xf32>
    %24 = vector.broadcast %22 : vector<1x128xf32> to vector<8x128xf32>
    %25 = arith.mulf %21, %24 : vector<8x128xf32>
    %cst_16 = arith.constant dense<0.000000e+00> : vector<8xf32>
    %26 = vector.multi_reduction <add>, %25, %cst_16 [1] : vector<8x128xf32> to vector<8xf32>
    %27 = vector.shape_cast %26 : vector<8xf32> to vector<8x1xf32>
    %28 = vector.broadcast %23 : vector<1x1xf32> to vector<8x1xf32>
    %29 = arith.addf %27, %28 : vector<8x1xf32>
    %c0_17 = arith.constant 0 : index
    %c0_18 = arith.constant 0 : index
    %30 = vector.load %arg8[%c0_17, %c0_18] : memref<8x1xf32, #tpu.memory_space<vmem>>, vector<8x1xf32>
    tpu.vector_store %arg8[%c0_17, %c0_18], %29 {strides = array<i32>} : memref<8x1xf32, #tpu.memory_space<vmem>>, vector<8x1xf32>,
    return
  }
  func.func @transform_0(%arg0: i32) -> (i32, i32) {
    %c0_i32 = arith.constant 0 : i32
    %c0_i32_0 = arith.constant 0 : i32
    return %arg0, %c0_i32 : i32, i32
  }
  func.func @transform_1(%arg0: i32) -> (i32, i32) {
    %c0_i32 = arith.constant 0 : i32
    %c0_i32_0 = arith.constant 0 : i32
    %c0_i32_1 = arith.constant 0 : i32
    return %c0_i32, %c0_i32_0 : i32, i32
  }
  func.func @transform_2(%arg0: i32) -> (i32, i32) {
    %c0_i32 = arith.constant 0 : i32
    %c0_i32_0 = arith.constant 0 : i32
    %c0_i32_1 = arith.constant 0 : i32
    return %c0_i32, %c0_i32_0 : i32, i32
  }
  func.func @transform_3(%arg0: i32) -> (i32, i32) {
    %c0_i32 = arith.constant 0 : i32
    %c0_i32_0 = arith.constant 0 : i32
    %c0_i32_1 = arith.constant 0 : i32
    return %c0_i32, %c0_i32_0 : i32, i32
  }
  func.func @transform_4(%arg0: i32) -> (i32, i32) {
    %c0_i32 = arith.constant 0 : i32
    %c0_i32_0 = arith.constant 0 : i32
    %c0_i32_1 = arith.constant 0 : i32
    return %c0_i32, %c0_i32_0 : i32, i32
  }
  func.func @transform_5(%arg0: i32) -> (i32, i32) {
    %c0_i32 = arith.constant 0 : i32
    %c0_i32_0 = arith.constant 0 : i32
    %c0_i32_1 = arith.constant 0 : i32
    return %c0_i32, %c0_i32_0 : i32, i32
  }
  func.func @transform_6(%arg0: i32) -> (i32, i32) {
    %c0_i32 = arith.constant 0 : i32
    %c0_i32_0 = arith.constant 0 : i32
    %c0_i32_1 = arith.constant 0 : i32
    return %c0_i32, %c0_i32_0 : i32, i32
  }
  func.func @transform_7(%arg0: i32) -> (i32, i32) {
    %c0_i32 = arith.constant 0 : i32
    %c0_i32_0 = arith.constant 0 : i32
    return %arg0, %c0_i32 : i32, i32
  }
}

</mosaic_0001>

<llo_original>
// kernel: mlp_forward.1
$region0: #{mlp_forward.1}
  #allocation0 [shape = 'u32[]', space=smem, size = 0x4, offset = 0x4, fixed_abs, tag = 'smem constant byte address 0x4 - core index']
  #allocation1 [shape = 'u32[144,128]{1,0:T(1,128)}', space=vmem, size = 0x12000, scoped, tag = 'internal scratch']
  #allocation2 [shape = 'f32[1,1]{1,0:T(1,128)S(1)}', space=vmem, size = 0x200, scoped, tag = 'scoped memory for mlp_forward.1']
  %s0 = inlined_call_operand.vmem [shape: bf16[8,128], index: 0, kind: input, shape index: {}]
  %s1 = inlined_call_operand.vmem [shape: bf16[128,128], index: 1, kind: input, shape index: {}]
  %s2 = inlined_call_operand.vmem [shape: f32[1,128], index: 2, kind: input, shape index: {}]
  %s3 = inlined_call_operand.vmem [shape: bf16[128,128], index: 3, kind: input, shape index: {}]
  %s4 = inlined_call_operand.vmem [shape: f32[1,128], index: 4, kind: input, shape index: {}]
  %s5 = inlined_call_operand.vmem [shape: f32[1,128], index: 5, kind: input, shape index: {}]
  %s6 = inlined_call_operand.<no memory space> [shape: f32[1,1], index: 6, kind: input, shape index: {}]
  %s7 = inlined_call_operand.vmem [shape: f32[8,1], index: 7, kind: output, shape index: {}]
  %s8 = sld [smem:[#allocation0]]
  $region38: #{mlp_forward.1} parent=0
    _
  %s10 = ssub.s32 1, %s8
  %s11 = scalar_select 0, %s10, %s8
  %v12 = vstv %s6
  %13 = vst [vmem:[#allocation2] sm:$0x1] %v12
  // Predicated region
  $region2: #{mlp_forward.1} parent=0 // pred_check
    _
  $region3: #{mlp_forward.1} parent=0 // pred_check_branch
    %15 = sbr.rel (0) target = $region5
  $region4: #{mlp_forward.1} parent=0 // pred_region
    _
  $region5: #{mlp_forward.1} parent=0 // pred_fallthru
    _
  // Predicated region
  $region6: #{mlp_forward.1} parent=0 // pred_check
    _
  $region7: #{mlp_forward.1} parent=0 // pred_check_branch
    %17 = sbr.rel (0) target = $region9
  $region8: #{mlp_forward.1} parent=0 // pred_region
    _
  $region9: #{mlp_forward.1} parent=0 // pred_fallthru
    _
  // Predicated region
  $region10: #{mlp_forward.1} parent=0 // pred_check
    _
  $region11: #{mlp_forward.1} parent=0 // pred_check_branch
    %19 = sbr.rel (0) target = $region13
  $region12: #{mlp_forward.1} parent=0 // pred_region
    _
  $region13: #{mlp_forward.1} parent=0 // pred_fallthru
    _
  // Predicated region
  $region14: #{mlp_forward.1} parent=0 // pred_check
    _
  $region15: #{mlp_forward.1} parent=0 // pred_check_branch
    %21 = sbr.rel (0) target = $region17
  $region16: #{mlp_forward.1} parent=0 // pred_region
    _
  $region17: #{mlp_forward.1} parent=0 // pred_fallthru
    _
  // Predicated region
  $region18: #{mlp_forward.1} parent=0 // pred_check
    _
  $region19: #{mlp_forward.1} parent=0 // pred_check_branch
    %23 = sbr.rel (0) target = $region21
  $region20: #{mlp_forward.1} parent=0 // pred_region
    _
  $region21: #{mlp_forward.1} parent=0 // pred_fallthru
    _
  // Predicated region
  $region22: #{mlp_forward.1} parent=0 // pred_check
    _
  $region23: #{mlp_forward.1} parent=0 // pred_check_branch
    %25 = sbr.rel (0) target = $region25
  $region24: #{mlp_forward.1} parent=0 // pred_region
    _
  $region25: #{mlp_forward.1} parent=0 // pred_fallthru
    _
  // Predicated region
  $region26: #{mlp_forward.1} parent=0 // pred_check
    _
  $region27: #{mlp_forward.1} parent=0 // pred_check_branch
    %27 = sbr.rel (0) target = $region29
  $region28: #{mlp_forward.1} parent=0 // pred_region
    _
  $region29: #{mlp_forward.1} parent=0 // pred_fallthru
    _
  %v29 = vld [vmem:[%s0] sm:$0xf]
  %v30 = vld [vmem:[%s1] sm:$0xf]
  %v31 = vld [vmem:[%s1 + $0x4] sm:$0xf]
  %v32 = vld [vmem:[%s1 + $0x8] sm:$0xf]
  %v33 = vld [vmem:[%s1 + $0xc] sm:$0xf]
  %v34 = vld [vmem:[%s1 + $0x10] sm:$0xf]
  %v35 = vld [vmem:[%s1 + $0x14] sm:$0xf]
  %v36 = vld [vmem:[%s1 + $0x18] sm:$0xf]
  %v37 = vld [vmem:[%s1 + $0x1c] sm:$0xf]
  %v38 = vld [vmem:[%s1 + $0x20] sm:$0xf]
  %v39 = vld [vmem:[%s1 + $0x24] sm:$0xf]
  %v40 = vld [vmem:[%s1 + $0x28] sm:$0xf]
  %v41 = vld [vmem:[%s1 + $0x2c] sm:$0xf]
  %v42 = vld [vmem:[%s1 + $0x30] sm:$0xf]
  %v43 = vld [vmem:[%s1 + $0x34] sm:$0xf]
  %v44 = vld [vmem:[%s1 + $0x38] sm:$0xf]
  %v45 = vld [vmem:[%s1 + $0x3c] sm:$0xf]
  %v46 = vld [vmem:[%s2] sm:$0x1]
  %v48 = vlaneseq
  %v49 = vshrl.u32 %v48, 7
  %v50 = vsub.s32 0, %v49
  %v51 = vrot.slane %v46, %v50
  %v69 = vunpack.c.l.b16 %v30
  %v70 = vunpack.c.l.b16 %v31
  %v71 = vunpack.c.l.b16 %v32
  %v72 = vunpack.c.l.b16 %v33
  %v73 = vunpack.c.l.b16 %v34
  %v74 = vunpack.c.l.b16 %v35
  %v75 = vunpack.c.l.b16 %v36
  %v76 = vunpack.c.l.b16 %v37
  %v77 = vunpack.c.l.b16 %v38
  %v78 = vunpack.c.l.b16 %v39
  %v79 = vunpack.c.l.b16 %v40
  %v80 = vunpack.c.l.b16 %v41
  %v81 = vunpack.c.l.b16 %v42
  %v82 = vunpack.c.l.b16 %v43
  %v83 = vunpack.c.l.b16 %v44
  %v84 = vunpack.c.l.b16 %v45
  %v85 = vpack.c.b16 %v70, %v69
  %v86 = vpack.c.b16 %v72, %v71
  %v87 = vpack.c.b16 %v74, %v73
  %v88 = vpack.c.b16 %v76, %v75
  %v89 = vpack.c.b16 %v78, %v77
  %v90 = vpack.c.b16 %v80, %v79
  %v91 = vpack.c.b16 %v82, %v81
  %v92 = vpack.c.b16 %v84, %v83
  %101 = vmatprep.subr.bf16.mxu0 0
  %102 = vmatpush1.bf16.msra.mxu0 %v85
  %103 = vmatprep.subr.bf16.mxu0 0
  %104 = vmatpush1.bf16.msra.mxu0 %v86
  %105 = vmatprep.subr.bf16.mxu0 0
  %106 = vmatpush1.bf16.msra.mxu0 %v87
  %107 = vmatprep.subr.bf16.mxu0 0
  %108 = vmatpush1.bf16.msra.mxu0 %v88
  %109 = vmatprep.subr.bf16.mxu0 0
  %110 = vmatpush1.bf16.msra.mxu0 %v89
  %111 = vmatprep.subr.bf16.mxu0 0
  %112 = vmatpush1.bf16.msra.mxu0 %v90
  %113 = vmatprep.subr.bf16.mxu0 0
  %114 = vmatpush1.bf16.msra.mxu0 %v91
  %115 = vmatprep.subr.bf16.mxu0 0
  %116 = vmatpush1.bf16.msra.mxu0 %v92
  %117 = vmatprep.subr.bf16.mxu0 0
  %118 = vmatpush1.bf16.msra.mxu0 0
  %119 = vmatprep.subr.bf16.mxu0 0
  %120 = vmatpush1.bf16.msra.mxu0 0
  %121 = vmatprep.subr.bf16.mxu0 0
  %122 = vmatpush1.bf16.msra.mxu0 0
  %123 = vmatprep.subr.bf16.mxu0 0
  %124 = vmatpush1.bf16.msra.mxu0 0
  %125 = vmatprep.subr.bf16.mxu0 0
  %126 = vmatpush1.bf16.msra.mxu0 0
  %127 = vmatprep.subr.bf16.mxu0 0
  %128 = vmatpush1.bf16.msra.mxu0 0
  %129 = vmatprep.subr.bf16.mxu0 0
  %130 = vmatpush1.bf16.msra.mxu0 0
  %131 = vmatprep.subr.bf16.mxu0 0
  %132 = vmatpush1.bf16.msra.mxu0 0
  %133 = vmatprep.mubr.bf16.mxu0 0
  %134 = vmatmul.mubr.bf16.gmra.mrb[0].mxu0 %v29
  %v135 = vpop.f32.mrb[0].mxu0
  %v136 = vadd.f32 %v51, %v135
  %v137 = vpop.f32.mrb[0].mxu0
  %v138 = vpop.f32.mrb[0].mxu0
  %v139 = vpop.f32.mrb[0].mxu0
  %140 = vdwg.mxu0
  %v141 = vxor.u32 %v136, 2147483648
  %v142 = vmul.f32 %v141, 1.442695
  %v143 = vpow.pop %v142
  %v144 = vadd.f32 %v143, 1.0
  %v145 = vrcp.pop %v144
  %v146 = vmul.f32 1.0, %v145
  %v147 = vpack.c.bf16 %v146, %v146
  %v148 = vld [vmem:[%s3] sm:$0xf]
  %v149 = vld [vmem:[%s3 + $0x4] sm:$0xf]
  %v150 = vld [vmem:[%s3 + $0x8] sm:$0xf]
  %v151 = vld [vmem:[%s3 + $0xc] sm:$0xf]
  %v152 = vld [vmem:[%s3 + $0x10] sm:$0xf]
  %v153 = vld [vmem:[%s3 + $0x14] sm:$0xf]
  %v154 = vld [vmem:[%s3 + $0x18] sm:$0xf]
  %v155 = vld [vmem:[%s3 + $0x1c] sm:$0xf]
  %v156 = vld [vmem:[%s3 + $0x20] sm:$0xf]
  %v157 = vld [vmem:[%s3 + $0x24] sm:$0xf]
  %v158 = vld [vmem:[%s3 + $0x28] sm:$0xf]
  %v159 = vld [vmem:[%s3 + $0x2c] sm:$0xf]
  %v160 = vld [vmem:[%s3 + $0x30] sm:$0xf]
  %v161 = vld [vmem:[%s3 + $0x34] sm:$0xf]
  %v162 = vld [vmem:[%s3 + $0x38] sm:$0xf]
  %v163 = vld [vmem:[%s3 + $0x3c] sm:$0xf]
  %v164 = vld [vmem:[%s4] sm:$0x1]
  %v166 = vlaneseq
  %v167 = vshrl.u32 %v166, 7
  %v168 = vsub.s32 0, %v167
  %v169 = vrot.slane %v164, %v168
  %v187 = vunpack.c.l.b16 %v148
  %v188 = vunpack.c.l.b16 %v149
  %v189 = vunpack.c.l.b16 %v150
  %v190 = vunpack.c.l.b16 %v151
  %v191 = vunpack.c.l.b16 %v152
  %v192 = vunpack.c.l.b16 %v153
  %v193 = vunpack.c.l.b16 %v154
  %v194 = vunpack.c.l.b16 %v155
  %v195 = vunpack.c.l.b16 %v156
  %v196 = vunpack.c.l.b16 %v157
  %v197 = vunpack.c.l.b16 %v158
  %v198 = vunpack.c.l.b16 %v159
  %v199 = vunpack.c.l.b16 %v160
  %v200 = vunpack.c.l.b16 %v161
  %v201 = vunpack.c.l.b16 %v162
  %v202 = vunpack.c.l.b16 %v163
  %v203 = vpack.c.b16 %v188, %v187
  %v204 = vpack.c.b16 %v190, %v189
  %v205 = vpack.c.b16 %v192, %v191
  %v206 = vpack.c.b16 %v194, %v193
  %v207 = vpack.c.b16 %v196, %v195
  %v208 = vpack.c.b16 %v198, %v197
  %v209 = vpack.c.b16 %v200, %v199
  %v210 = vpack.c.b16 %v202, %v201
  %219 = vmatprep.subr.bf16.mxu0 0
  %220 = vmatpush1.bf16.msra.mxu0 %v203
  %221 = vmatprep.subr.bf16.mxu0 0
  %222 = vmatpush1.bf16.msra.mxu0 %v204
  %223 = vmatprep.subr.bf16.mxu0 0
  %224 = vmatpush1.bf16.msra.mxu0 %v205
  %225 = vmatprep.subr.bf16.mxu0 0
  %226 = vmatpush1.bf16.msra.mxu0 %v206
  %227 = vmatprep.subr.bf16.mxu0 0
  %228 = vmatpush1.bf16.msra.mxu0 %v207
  %229 = vmatprep.subr.bf16.mxu0 0
  %230 = vmatpush1.bf16.msra.mxu0 %v208
  %231 = vmatprep.subr.bf16.mxu0 0
  %232 = vmatpush1.bf16.msra.mxu0 %v209
  %233 = vmatprep.subr.bf16.mxu0 0
  %234 = vmatpush1.bf16.msra.mxu0 %v210
  %235 = vmatprep.subr.bf16.mxu0 0
  %236 = vmatpush1.bf16.msra.mxu0 0
  %237 = vmatprep.subr.bf16.mxu0 0
  %238 = vmatpush1.bf16.msra.mxu0 0
  %239 = vmatprep.subr.bf16.mxu0 0
  %240 = vmatpush1.bf16.msra.mxu0 0
  %241 = vmatprep.subr.bf16.mxu0 0
  %242 = vmatpush1.bf16.msra.mxu0 0
  %243 = vmatprep.subr.bf16.mxu0 0
  %244 = vmatpush1.bf16.msra.mxu0 0
  %245 = vmatprep.subr.bf16.mxu0 0
  %246 = vmatpush1.bf16.msra.mxu0 0
  %247 = vmatprep.subr.bf16.mxu0 0
  %248 = vmatpush1.bf16.msra.mxu0 0
  %249 = vmatprep.subr.bf16.mxu0 0
  %250 = vmatpush1.bf16.msra.mxu0 0
  %251 = vmatprep.mubr.bf16.mxu0 0
  %252 = vmatmul.mubr.bf16.gmra.mrb[0].mxu0 %v147
  %v253 = vpop.f32.mrb[0].mxu0
  %v254 = vadd.f32 %v169, %v253
  %v255 = vpop.f32.mrb[0].mxu0
  %v256 = vpop.f32.mrb[0].mxu0
  %v257 = vpop.f32.mrb[0].mxu0
  %258 = vdwg.mxu0
  %v259 = vxor.u32 %v254, 2147483648
  %v260 = vmul.f32 %v259, 1.442695
  %v261 = vpow.pop %v260
  %v262 = vadd.f32 %v261, 1.0
  %v263 = vrcp.pop %v262
  %v264 = vmul.f32 1.0, %v263
  %v265 = vld [vmem:[%s5] sm:$0x1]
  %v266 = vld [vmem:[#allocation2] sm:$0x1]
  %v268 = vlaneseq
  %v269 = vshrl.u32 %v268, 7
  %v270 = vsub.s32 0, %v269
  %v271 = vrot.slane %v265, %v270
  %v273 = vmul.f32 %v264, %v271
  %274 = vadd.xlane.f32.xlu0 %v273
  %v275 = vpop.xlane.xlu0 %274
  %v277 = vlaneseq
  %v278 = vshrl.u32 %v277, 7
  %v279 = vsub.s32 0, %v278
  %v280 = vrot.slane %v266, %v279
  %v282 = vadd.f32 %v275, %v280
  %vm283 = vcmask 7168
  %284 = vst.msk [vmem:[%s7] sm:$0xff] %vm283, %v282
  // Predicated region
  $region30: #{mlp_forward.1} parent=0 // pred_check
    _
  $region31: #{mlp_forward.1} parent=0 // pred_check_branch
    %286 = sbr.rel (0) target = $region33
  $region32: #{mlp_forward.1} parent=0 // pred_region
    _
  $region33: #{mlp_forward.1} parent=0 // pred_fallthru
    _
  // Predicated region
  $region34: #{mlp_forward.1} parent=0 // pred_check
    _
  $region35: #{mlp_forward.1} parent=0 // pred_check_branch
    %288 = sbr.rel (0) target = $region37
  $region36: #{mlp_forward.1} parent=0 // pred_region
    _
  $region37: #{mlp_forward.1} parent=0 // pred_fallthru
    _

</llo_original>
